<compile_context>
chip_gen: v7x
topology: tpu7x:2x2x1
jax: 0.10.0
libtpu: 0.0.40
codegen_flags: <defaults>
</compile_context>

<pallas_src>
import jax
import jax.numpy as jnp
from jax.experimental import pallas as pl
from jax.experimental.pallas import tpu as pltpu

D_IN, D_H1, D_H2, D_OUT = 4, 16, 12, 3


def _round_up(n, m):
    return ((n + m - 1) // m) * m


# ----------------------------------------------------------------------------
# Kernel
# ----------------------------------------------------------------------------
def mlp_kernel(x_ref, w1_ref, b1_ref, w2_ref, b2_ref, w3_ref, b3_ref, o_ref):
    # x_ref: [8, TB]  -- two batch chunks stacked on sublanes, batch on lanes.
    # w*_ref: block-diagonal duplicated weights ([32,8], [24,32], [6,24]).
    # b*_ref: duplicated biases as [rows, 1] columns (broadcast across lanes).
    # o_ref: [6, TB]  -- rows 0:3 chunk A output, rows 3:6 chunk B output.
    x = x_ref[...].astype(jnp.float32)  # upcast immediately (v5e VPU has no bf16)
    h1 = jnp.maximum(
        jnp.dot(w1_ref[...], x, preferred_element_type=jnp.float32) + b1_ref[...], 0.0)
    h2 = jnp.maximum(
        jnp.dot(w2_ref[...], h1, preferred_element_type=jnp.float32) + b2_ref[...], 0.0)
    y = jnp.dot(w3_ref[...], h2, preferred_element_type=jnp.float32) + b3_ref[...]
    o_ref[...] = y.astype(o_ref.dtype)


# ----------------------------------------------------------------------------
# Parameter prep (done once, outside the kernel)
# ----------------------------------------------------------------------------
def prep_params(p):
    """Build block-diagonal duplicated weights / stacked biases (all f32)."""

    def bdiag(w):
        w = w.astype(jnp.float32)
        o, i = w.shape
        blk = jnp.zeros((2 * o, 2 * i), jnp.float32)
        return blk.at[:o, :i].set(w).at[o:, i:].set(w)

    def bcol(b):
        b = b.astype(jnp.float32)
        return jnp.concatenate([b, b])[:, None]

    return (bdiag(p["w1"]), bcol(p["b1"]),
            bdiag(p["w2"]), bcol(p["b2"]),
            bdiag(p["w3"]), bcol(p["b3"]))


# ----------------------------------------------------------------------------
# Tiling policy
# ----------------------------------------------------------------------------
def _choose_tile(lane_len, batch_tile):
    # Force a multiple of 128 regardless of caller input (lane-dense stores,
    # (8,128) BlockSpec rule).
    tb_cap = max(128, _round_up(int(batch_tile), 128))
    # Keep >= 2 grid steps whenever there is enough work so v7x's two
    # TensorCores both get batch tiles; fall back to one step only for tiny B.
    half = (lane_len + 1) // 2
    tb = min(tb_cap, _round_up(max(half, 1), 128))
    return max(tb, 128)


# ----------------------------------------------------------------------------
# Packed (zero-extra-copy) entry point: feature-major dual-chunk layout.
#   x8:  [8, L]  rows 0:4 = chunk A features, rows 4:8 = chunk B features
#   out: [6, L]  rows 0:3 = chunk A outputs,  rows 3:6 = chunk B outputs
# ----------------------------------------------------------------------------
def ann_two_hid_forward_packed(x8, pparams, *, batch_tile=65536):
    L = x8.shape[1]
    tb = _choose_tile(L, batch_tile)
    lane_pad = _round_up(L, tb)
    if lane_pad != L:
        x8 = jnp.pad(x8, ((0, 0), (0, lane_pad - L)))
    w1b, b1b, w2b, b2b, w3b, b3b = pparams

    y6 = pl.pallas_call(
        mlp_kernel,
        out_shape=jax.ShapeDtypeStruct((2 * D_OUT, lane_pad), x8.dtype),
        grid=(lane_pad // tb,),
        in_specs=[
            pl.BlockSpec((2 * D_IN, tb), lambda i: (0, i)),  # streamed input
            pl.BlockSpec(w1b.shape, lambda i: (0, 0)),       # resident params
            pl.BlockSpec(b1b.shape, lambda i: (0, 0)),
            pl.BlockSpec(w2b.shape, lambda i: (0, 0)),
            pl.BlockSpec(b2b.shape, lambda i: (0, 0)),
            pl.BlockSpec(w3b.shape, lambda i: (0, 0)),
            pl.BlockSpec(b3b.shape, lambda i: (0, 0)),
        ],
        out_specs=pl.BlockSpec((2 * D_OUT, tb), lambda i: (0, i)),
        compiler_params=pltpu.CompilerParams(
            dimension_semantics=("parallel",),  # megacore split on v7x
        ),
    )(x8, w1b, b1b, w2b, b2b, w3b, b3b)

    # Padded tail columns contain bias/ReLU garbage -> slice before returning.
    return y6[:, :L]


# ----------------------------------------------------------------------------
# PyTorch-layout convenience wrapper ([B, 4] -> [B, 3]).
# The transpose + dual-chunk sublane pack below is the ONE layout round-trip;
# callers that keep activations feature-major/packed should call
# ann_two_hid_forward_packed directly and avoid it.
# ----------------------------------------------------------------------------
def ann_two_hid_forward(x, params, *, batch_tile=65536, io_dtype=jnp.float32):
    B = x.shape[0]
    B_even = _round_up(max(B, 1), 2)
    half = B_even // 2

    xp = jnp.pad(x.astype(jnp.float32), ((0, B_even - B), (0, 0)))
    # [B_even, 4] -> [2, half, 4] -> [2, 4, half] -> [8, half]
    x8 = xp.reshape(2, half, D_IN).transpose(0, 2, 1).reshape(2 * D_IN, half)
    x8 = x8.astype(io_dtype)

    pparams = prep_params(params)
    y6 = ann_two_hid_forward_packed(x8, pparams, batch_tile=batch_tile)

    y = y6.astype(jnp.float32)
    # [6, half] -> [2, 3, half] -> [2, half, 3] -> [B_even, 3]
    y = y.reshape(2, D_OUT, half).transpose(0, 2, 1).reshape(B_even, D_OUT)
    return y[:B]


# ----------------------------------------------------------------------------
# Init + pure-JAX reference
# ----------------------------------------------------------------------------
def init_params(key):
    """Deterministic init mimicking nn.Linear's U(-1/sqrt(fan_in), +) init."""
    ks = jax.random.split(key, 6)

    def linear(kw, kb, fan_in, fan_out):
        bound = 1.0 / jnp.sqrt(fan_in)
        w = jax.random.uniform(kw, (fan_out, fan_in), jnp.float32, -bound, bound)
        b = jax.random.uniform(kb, (fan_out,), jnp.float32, -bound, bound)
        return w, b

    w1, b1 = linear(ks[0], ks[1], D_IN, D_H1)
    w2, b2 = linear(ks[2], ks[3], D_H1, D_H2)
    w3, b3 = linear(ks[4], ks[5], D_H2, D_OUT)
    return {"w1": w1, "b1": b1, "w2": w2, "b2": b2, "w3": w3, "b3": b3}


def reference_forward(x, p):
    h1 = jnp.maximum(x @ p["w1"].T + p["b1"], 0.0)
    h2 = jnp.maximum(h1 @ p["w2"].T + p["b2"], 0.0)
    return h2 @ p["w3"].T + p["b3"]


if __name__ == "__main__":
    root = jax.random.PRNGKey(0)
    pkey, xkey = jax.random.split(root)
    params = init_params(pkey)

    # 1) Small example consistent with the module (in_features = 4), exact f32.
    x = jax.random.normal(xkey, (8, D_IN), jnp.float32)
    y = jax.block_until_ready(ann_two_hid_forward(x, params))
    assert y.shape == (8, D_OUT)
    assert jnp.allclose(y, reference_forward(x, params), atol=1e-5, rtol=1e-5)

    # 2) Multi-step padded batch grid (B=300, tile 128 -> grid=(2,)), exact f32.
    x2 = jax.random.normal(xkey, (300, D_IN), jnp.float32)
    y2 = jax.block_until_ready(ann_two_hid_forward(x2, params, batch_tile=128))
    assert y2.shape == (300, D_OUT)
    assert jnp.allclose(y2, reference_forward(x2, params), atol=1e-5, rtol=1e-5)

    # 3) Non-128-multiple batch_tile gets forced to a 128 multiple (1000 -> 1024).
    x3 = jax.random.normal(xkey, (5000, D_IN), jnp.float32)
    y3 = jax.block_until_ready(ann_two_hid_forward(x3, params, batch_tile=1000))
    assert y3.shape == (5000, D_OUT)
    assert jnp.allclose(y3, reference_forward(x3, params), atol=1e-5, rtol=1e-5)

    # 4) bf16 streaming I/O (halved HBM bytes) -- loosened tolerance by design.
    x4 = jax.random.normal(xkey, (1000, D_IN), jnp.float32)
    y4 = jax.block_until_ready(
        ann_two_hid_forward(x4, params, io_dtype=jnp.bfloat16))
    assert y4.shape == (1000, D_OUT)
    assert jnp.allclose(y4, reference_forward(x4, params), atol=5e-2, rtol=5e-2)

    print("KERNEL_OK")
</pallas_src>

<mosaic_0001>
module attributes {stable_mosaic.version = 11 : i64} {
  func.func @mlp_kernel(%arg0: i32, %arg1: memref<8x128xf32, #tpu.memory_space<vmem>>, %arg2: memref<32x8xf32, #tpu.memory_space<vmem>>, %arg3: memref<32x1xf32, #tpu.memory_space<vmem>>, %arg4: memref<24x32xf32, #tpu.memory_space<vmem>>, %arg5: memref<24x1xf32, #tpu.memory_space<vmem>>, %arg6: memref<6x24xf32, #tpu.memory_space<vmem>>, %arg7: memref<6x1xf32, #tpu.memory_space<vmem>>, %arg8: memref<6x128xf32, #tpu.memory_space<vmem>>) attributes {dimension_semantics = [#tpu.dimension_semantics<parallel>], iteration_bounds = array<i64: 1>, scalar_prefetch = 0 : i64, scratch_operands = 0 : i64, tpu.core_type = #tpu.core_type<tc>, window_params = [{transform_indices = @transform_0, window_bounds = array<i64: 8, 128>}, {pipeline_mode = #tpu.pipeline_mode<synchronous>, transform_indices = @transform_1, window_bounds = array<i64: 32, 8>}, {pipeline_mode = #tpu.pipeline_mode<synchronous>, transform_indices = @transform_2, window_bounds = array<i64: 32, 1>}, {pipeline_mode = #tpu.pipeline_mode<synchronous>, transform_indices = @transform_3, window_bounds = array<i64: 24, 32>}, {pipeline_mode = #tpu.pipeline_mode<synchronous>, transform_indices = @transform_4, window_bounds = array<i64: 24, 1>}, {pipeline_mode = #tpu.pipeline_mode<synchronous>, transform_indices = @transform_5, window_bounds = array<i64: 6, 24>}, {pipeline_mode = #tpu.pipeline_mode<synchronous>, transform_indices = @transform_6, window_bounds = array<i64: 6, 1>}, {transform_indices = @transform_7, window_bounds = array<i64: 6, 128>}]} {
    %c0 = arith.constant 0 : index
    %c0_0 = arith.constant 0 : index
    %0 = vector.load %arg1[%c0, %c0_0] : memref<8x128xf32, #tpu.memory_space<vmem>>, vector<8x128xf32>
    %c0_1 = arith.constant 0 : index
    %c0_2 = arith.constant 0 : index
    %1 = vector.load %arg2[%c0_1, %c0_2] : memref<32x8xf32, #tpu.memory_space<vmem>>, vector<32x8xf32>
    %cst = arith.constant dense<0.000000e+00> : vector<32x128xf32>
    %2 = tpu.matmul %1, %0, %cst {dimension_numbers = #tpu.dot_dimension_numbers<[1], [0], [0], [1], [0, 0, 1, 1], [], []>} : vector<32x8xf32>, vector<8x128xf32>, vector<32x128xf32> -> vector<32x128xf32>
    %c0_3 = arith.constant 0 : index
    %c0_4 = arith.constant 0 : index
    %3 = vector.load %arg3[%c0_3, %c0_4] : memref<32x1xf32, #tpu.memory_space<vmem>>, vector<32x1xf32>
    %4 = vector.broadcast %3 : vector<32x1xf32> to vector<32x128xf32>
    %5 = arith.addf %2, %4 : vector<32x128xf32>
    %cst_5 = arith.constant 0.000000e+00 : f32
    %6 = vector.broadcast %cst_5 : f32 to vector<32x128xf32>
    %7 = arith.maximumf %5, %6 : vector<32x128xf32>
    %c0_6 = arith.constant 0 : index
    %c0_7 = arith.constant 0 : index
    %8 = vector.load %arg4[%c0_6, %c0_7] : memref<24x32xf32, #tpu.memory_space<vmem>>, vector<24x32xf32>
    %cst_8 = arith.constant dense<0.000000e+00> : vector<24x128xf32>
    %9 = tpu.matmul %8, %7, %cst_8 {dimension_numbers = #tpu.dot_dimension_numbers<[1], [0], [0], [1], [0, 0, 1, 1], [], []>} : vector<24x32xf32>, vector<32x128xf32>, vector<24x128xf32> -> vector<24x128xf32>
    %c0_9 = arith.constant 0 : index
    %c0_10 = arith.constant 0 : index
    %10 = vector.load %arg5[%c0_9, %c0_10] : memref<24x1xf32, #tpu.memory_space<vmem>>, vector<24x1xf32>
    %11 = vector.broadcast %10 : vector<24x1xf32> to vector<24x128xf32>
    %12 = arith.addf %9, %11 : vector<24x128xf32>
    %cst_11 = arith.constant 0.000000e+00 : f32
    %13 = vector.broadcast %cst_11 : f32 to vector<24x128xf32>
    %14 = arith.maximumf %12, %13 : vector<24x128xf32>
    %c0_12 = arith.constant 0 : index
    %c0_13 = arith.constant 0 : index
    %15 = vector.load %arg6[%c0_12, %c0_13] : memref<6x24xf32, #tpu.memory_space<vmem>>, vector<6x24xf32>
    %cst_14 = arith.constant dense<0.000000e+00> : vector<6x128xf32>
    %16 = tpu.matmul %15, %14, %cst_14 {dimension_numbers = #tpu.dot_dimension_numbers<[1], [0], [0], [1], [0, 0, 1, 1], [], []>} : vector<6x24xf32>, vector<24x128xf32>, vector<6x128xf32> -> vector<6x128xf32>
    %c0_15 = arith.constant 0 : index
    %c0_16 = arith.constant 0 : index
    %17 = vector.load %arg7[%c0_15, %c0_16] : memref<6x1xf32, #tpu.memory_space<vmem>>, vector<6x1xf32>
    %18 = vector.broadcast %17 : vector<6x1xf32> to vector<6x128xf32>
    %19 = arith.addf %16, %18 : vector<6x128xf32>
    %c0_17 = arith.constant 0 : index
    %c0_18 = arith.constant 0 : index
    %20 = vector.load %arg8[%c0_17, %c0_18] : memref<6x128xf32, #tpu.memory_space<vmem>>, vector<6x128xf32>
    tpu.vector_store %arg8[%c0_17, %c0_18], %19 {strides = array<i32>} : memref<6x128xf32, #tpu.memory_space<vmem>>, vector<6x128xf32>,
    return
  }
  func.func @transform_0(%arg0: i32) -> (i32, i32) {
    %c0_i32 = arith.constant 0 : i32
    %c0_i32_0 = arith.constant 0 : i32
    return %c0_i32, %arg0 : i32, i32
  }
  func.func @transform_1(%arg0: i32) -> (i32, i32) {
    %c0_i32 = arith.constant 0 : i32
    %c0_i32_0 = arith.constant 0 : i32
    %c0_i32_1 = arith.constant 0 : i32
    return %c0_i32, %c0_i32_0 : i32, i32
  }
  func.func @transform_2(%arg0: i32) -> (i32, i32) {
    %c0_i32 = arith.constant 0 : i32
    %c0_i32_0 = arith.constant 0 : i32
    %c0_i32_1 = arith.constant 0 : i32
    return %c0_i32, %c0_i32_0 : i32, i32
  }
  func.func @transform_3(%arg0: i32) -> (i32, i32) {
    %c0_i32 = arith.constant 0 : i32
    %c0_i32_0 = arith.constant 0 : i32
    %c0_i32_1 = arith.constant 0 : i32
    return %c0_i32, %c0_i32_0 : i32, i32
  }
  func.func @transform_4(%arg0: i32) -> (i32, i32) {
    %c0_i32 = arith.constant 0 : i32
    %c0_i32_0 = arith.constant 0 : i32
    %c0_i32_1 = arith.constant 0 : i32
    return %c0_i32, %c0_i32_0 : i32, i32
  }
  func.func @transform_5(%arg0: i32) -> (i32, i32) {
    %c0_i32 = arith.constant 0 : i32
    %c0_i32_0 = arith.constant 0 : i32
    %c0_i32_1 = arith.constant 0 : i32
    return %c0_i32, %c0_i32_0 : i32, i32
  }
  func.func @transform_6(%arg0: i32) -> (i32, i32) {
    %c0_i32 = arith.constant 0 : i32
    %c0_i32_0 = arith.constant 0 : i32
    %c0_i32_1 = arith.constant 0 : i32
    return %c0_i32, %c0_i32_0 : i32, i32
  }
  func.func @transform_7(%arg0: i32) -> (i32, i32) {
    %c0_i32 = arith.constant 0 : i32
    %c0_i32_0 = arith.constant 0 : i32
    return %c0_i32, %arg0 : i32, i32
  }
}

</mosaic_0001>

<llo_original>
// kernel: tpu_custom_call.1
$region0: #{tpu_custom_call.1}
  #allocation0 [shape = 'u32[]', space=smem, size = 0x4, offset = 0x4, fixed_abs, tag = 'smem constant byte address 0x4 - core index']
  #allocation1 [shape = 'u32[144,128]{1,0:T(1,128)}', space=vmem, size = 0x12000, scoped, tag = 'internal scratch']
  %s0 = inlined_call_operand.vmem [shape: f32[8,128], index: 0, kind: input, shape index: {}]
  %s1 = inlined_call_operand.vmem [shape: f32[32,8], index: 1, kind: input, shape index: {}]
  %s2 = inlined_call_operand.vmem [shape: f32[32,1], index: 2, kind: input, shape index: {}]
  %s3 = inlined_call_operand.vmem [shape: f32[24,32], index: 3, kind: input, shape index: {}]
  %s4 = inlined_call_operand.vmem [shape: f32[24,1], index: 4, kind: input, shape index: {}]
  %s5 = inlined_call_operand.vmem [shape: f32[6,24], index: 5, kind: input, shape index: {}]
  %s6 = inlined_call_operand.vmem [shape: f32[6,1], index: 6, kind: input, shape index: {}]
  %s7 = inlined_call_operand.hbm [shape: f32[6,128], index: 7, kind: output, shape index: {}]
  %s8 = sld [smem:[#allocation0]]
  $region38: #{tpu_custom_call.1} parent=0
    _
  %s10 = ssub.s32 1, %s8
  %s11 = scalar_select 0, %s10, %s8
  $region1: #{tpu_custom_call.1} parent=0
    #allocation2 [shape = 'u8[4096]{0}', space=vmem, size = 0x1000, scoped, tag = 'output window, operand 0, single buffered']
    #allocation3 [shape = 's32[1]{0}', space=sflag, size = 0x4, scoped, tag = 'scoped memory for tpu_custom_call.1']
    %12 = vsyncpa [#allocation3], 0
    // Predicated region
    $region2: #{tpu_custom_call.1} parent=1 // pred_check
      _
    $region3: #{tpu_custom_call.1} parent=1 // pred_check_branch
      %14 = sbr.rel (0) target = $region5
    $region4: #{tpu_custom_call.1} parent=1 // pred_region
      _
    $region5: #{tpu_custom_call.1} parent=1 // pred_fallthru
      _
    // Predicated region
    $region6: #{tpu_custom_call.1} parent=1 // pred_check
      _
    $region7: #{tpu_custom_call.1} parent=1 // pred_check_branch
      %16 = sbr.rel (0) target = $region9
    $region8: #{tpu_custom_call.1} parent=1 // pred_region
      _
    $region9: #{tpu_custom_call.1} parent=1 // pred_fallthru
      _
    // Predicated region
    $region10: #{tpu_custom_call.1} parent=1 // pred_check
      _
    $region11: #{tpu_custom_call.1} parent=1 // pred_check_branch
      %18 = sbr.rel (0) target = $region13
    $region12: #{tpu_custom_call.1} parent=1 // pred_region
      _
    $region13: #{tpu_custom_call.1} parent=1 // pred_fallthru
      _
    // Predicated region
    $region14: #{tpu_custom_call.1} parent=1 // pred_check
      _
    $region15: #{tpu_custom_call.1} parent=1 // pred_check_branch
      %20 = sbr.rel (0) target = $region17
    $region16: #{tpu_custom_call.1} parent=1 // pred_region
      _
    $region17: #{tpu_custom_call.1} parent=1 // pred_fallthru
      _
    // Predicated region
    $region18: #{tpu_custom_call.1} parent=1 // pred_check
      _
    $region19: #{tpu_custom_call.1} parent=1 // pred_check_branch
      %22 = sbr.rel (0) target = $region21
    $region20: #{tpu_custom_call.1} parent=1 // pred_region
      _
    $region21: #{tpu_custom_call.1} parent=1 // pred_fallthru
      _
    // Predicated region
    $region22: #{tpu_custom_call.1} parent=1 // pred_check
      _
    $region23: #{tpu_custom_call.1} parent=1 // pred_check_branch
      %24 = sbr.rel (0) target = $region25
    $region24: #{tpu_custom_call.1} parent=1 // pred_region
      _
    $region25: #{tpu_custom_call.1} parent=1 // pred_fallthru
      _
    // Predicated region
    $region26: #{tpu_custom_call.1} parent=1 // pred_check
      _
    $region27: #{tpu_custom_call.1} parent=1 // pred_check_branch
      %26 = sbr.rel (0) target = $region29
    $region28: #{tpu_custom_call.1} parent=1 // pred_region
      _
    $region29: #{tpu_custom_call.1} parent=1 // pred_fallthru
      _
    %v27 = vld [vmem:[%s0] sm:$0xff]
    %v28 = vld [vmem:[%s1] sm:$0xff]
    %v29 = vld [vmem:[%s1 + $0x8] sm:$0xff]
    %v30 = vld [vmem:[%s1 + $0x10] sm:$0xff]
    %v31 = vld [vmem:[%s1 + $0x18] sm:$0xff]
    %v32 = vld [vmem:[%s2] sm:$0xff]
    %v33 = vld [vmem:[%s2 + $0x8] sm:$0xff]
    %v34 = vld [vmem:[%s2 + $0x10] sm:$0xff]
    %v35 = vld [vmem:[%s2 + $0x18] sm:$0xff]
    %37 = vset.pattern.permute.xlu0 0
    %38 = vperm.xlu0 %37, %v32
    %v39 = vpop.permute.xlu0 %38
    %42 = vset.pattern.permute.xlu0 0
    %43 = vperm.xlu0 %42, %v33
    %v44 = vpop.permute.xlu0 %43
    %47 = vset.pattern.permute.xlu0 0
    %48 = vperm.xlu0 %47, %v34
    %v49 = vpop.permute.xlu0 %48
    %52 = vset.pattern.permute.xlu0 0
    %53 = vperm.xlu0 %52, %v35
    %v54 = vpop.permute.xlu0 %53
    %vm56 = vcmask 64512
    %v58 = vsel %vm56, %v28, 0
    %v61 = vsel %vm56, %v29, 0
    %v64 = vsel %vm56, %v30, 0
    %v67 = vsel %vm56, %v31, 0
    %69 = vmatprep.subr.mxu0 0.0
    %70 = vmatpush1.msra.mxu0 %v27
    %71 = vmatprep.subr.mxu0 0.0
    %72 = vmatpush1.msra.mxu0 0.0
    %73 = vmatprep.subr.mxu0 0.0
    %74 = vmatpush1.msra.mxu0 0.0
    %75 = vmatprep.subr.mxu0 0.0
    %76 = vmatpush1.msra.mxu0 0.0
    %77 = vmatprep.subr.mxu0 0.0
    %78 = vmatpush1.msra.mxu0 0.0
    %79 = vmatprep.subr.mxu0 0.0
    %80 = vmatpush1.msra.mxu0 0.0
    %81 = vmatprep.subr.mxu0 0.0
    %82 = vmatpush1.msra.mxu0 0.0
    %83 = vmatprep.subr.mxu0 0.0
    %84 = vmatpush1.msra.mxu0 0.0
    %85 = vmatprep.subr.mxu0 0.0
    %86 = vmatpush1.msra.mxu0 0.0
    %87 = vmatprep.subr.mxu0 0.0
    %88 = vmatpush1.msra.mxu0 0.0
    %89 = vmatprep.subr.mxu0 0.0
    %90 = vmatpush1.msra.mxu0 0.0
    %91 = vmatprep.subr.mxu0 0.0
    %92 = vmatpush1.msra.mxu0 0.0
    %93 = vmatprep.subr.mxu0 0.0
    %94 = vmatpush1.msra.mxu0 0.0
    %95 = vmatprep.subr.mxu0 0.0
    %96 = vmatpush1.msra.mxu0 0.0
    %97 = vmatprep.subr.mxu0 0.0
    %98 = vmatpush1.msra.mxu0 0.0
    %99 = vmatprep.subr.mxu0 0.0
    %100 = vmatpush1.msra.mxu0 0.0
    %101 = vmatprep.subr.mxu0 0.0
    %102 = vmatpush1.msra.mxu0 0.0
    %103 = vmatprep.subr.mxu0 0.0
    %104 = vmatpush1.msra.mxu0 0.0
    %105 = vmatprep.subr.mxu0 0.0
    %106 = vmatpush1.msra.mxu0 0.0
    %107 = vmatprep.subr.mxu0 0.0
    %108 = vmatpush1.msra.mxu0 0.0
    %109 = vmatprep.subr.mxu0 0.0
    %110 = vmatpush1.msra.mxu0 0.0
    %111 = vmatprep.subr.mxu0 0.0
    %112 = vmatpush1.msra.mxu0 0.0
    %113 = vmatprep.subr.mxu0 0.0
    %114 = vmatpush1.msra.mxu0 0.0
    %115 = vmatprep.subr.mxu0 0.0
    %116 = vmatpush1.msra.mxu0 0.0
    %117 = vmatprep.subr.mxu0 0.0
    %118 = vmatpush1.msra.mxu0 0.0
    %119 = vmatprep.subr.mxu0 0.0
    %120 = vmatpush1.msra.mxu0 0.0
    %121 = vmatprep.subr.mxu0 0.0
    %122 = vmatpush1.msra.mxu0 0.0
    %123 = vmatprep.subr.mxu0 0.0
    %124 = vmatpush1.msra.mxu0 0.0
    %125 = vmatprep.subr.mxu0 0.0
    %126 = vmatpush1.msra.mxu0 0.0
    %127 = vmatprep.subr.mxu0 0.0
    %128 = vmatpush1.msra.mxu0 0.0
    %129 = vmatprep.subr.mxu0 0.0
    %130 = vmatpush1.msra.mxu0 0.0
    %131 = vmatprep.subr.mxu0 0.0
    %132 = vmatpush1.msra.mxu0 0.0
    %133 = vmatprep.mubr.f32.mxu0 0.0
    %134 = vmatmul.mubr.f32.gmra.mrb[0].mxu0 %v58
    %v135 = vpop.f32.mrb[0].mxu0
    %v136 = vadd.f32 %v39, %v135
    %v137 = vpop.f32.mrb[0].mxu0
    %138 = vmatprep.mubr.f32.mxu0 0.0
    %139 = vmatmul.mubr.f32.gmra.mrb[0].mxu0 %v61
    %v140 = vpop.f32.mrb[0].mxu0
    %v141 = vadd.f32 %v44, %v140
    %v142 = vpop.f32.mrb[0].mxu0
    %143 = vmatprep.mubr.f32.mxu0 0.0
    %144 = vmatmul.mubr.f32.gmra.mrb[0].mxu0 %v64
    %v145 = vpop.f32.mrb[0].mxu0
    %v146 = vadd.f32 %v49, %v145
    %v147 = vpop.f32.mrb[0].mxu0
    %148 = vmatprep.mubr.f32.mxu0 0.0
    %149 = vmatmul.mubr.f32.gmra.mrb[0].mxu0 %v67
    %v150 = vpop.f32.mrb[0].mxu0
    %v151 = vadd.f32 %v54, %v150
    %v152 = vpop.f32.mrb[0].mxu0
    %153 = vdwg.mxu0
    %v154 = vmax.f32 %v136, 0.0
    %v155 = vmax.f32 %v141, 0.0
    %v156 = vmax.f32 %v146, 0.0
    %v157 = vmax.f32 %v151, 0.0
    %v158 = vld [vmem:[%s3] sm:$0xff]
    %v159 = vld [vmem:[%s3 + $0x8] sm:$0xff]
    %v160 = vld [vmem:[%s3 + $0x10] sm:$0xff]
    %v161 = vld [vmem:[%s4] sm:$0xff]
    %v162 = vld [vmem:[%s4 + $0x8] sm:$0xff]
    %v163 = vld [vmem:[%s4 + $0x10] sm:$0xff]
    %165 = vset.pattern.permute.xlu0 0
    %166 = vperm.xlu0 %165, %v161
    %v167 = vpop.permute.xlu0 %166
    %170 = vset.pattern.permute.xlu0 0
    %171 = vperm.xlu0 %170, %v162
    %v172 = vpop.permute.xlu0 %171
    %175 = vset.pattern.permute.xlu0 0
    %176 = vperm.xlu0 %175, %v163
    %v177 = vpop.permute.xlu0 %176
    %vm179 = vcmask 261120
    %v181 = vsel %vm179, %v158, 0
    %v184 = vsel %vm179, %v159, 0
    %v187 = vsel %vm179, %v160, 0
    %189 = vmatprep.subr.mxu0 0.0
    %190 = vmatpush1.msra.mxu0 %v154
    %191 = vmatprep.subr.mxu0 0.0
    %192 = vmatpush1.msra.mxu0 %v155
    %193 = vmatprep.subr.mxu0 0.0
    %194 = vmatpush1.msra.mxu0 %v156
    %195 = vmatprep.subr.mxu0 0.0
    %196 = vmatpush1.msra.mxu0 %v157
    %197 = vmatprep.subr.mxu0 0.0
    %198 = vmatpush1.msra.mxu0 0.0
    %199 = vmatprep.subr.mxu0 0.0
    %200 = vmatpush1.msra.mxu0 0.0
    %201 = vmatprep.subr.mxu0 0.0
    %202 = vmatpush1.msra.mxu0 0.0
    %203 = vmatprep.subr.mxu0 0.0
    %204 = vmatpush1.msra.mxu0 0.0
    %205 = vmatprep.subr.mxu0 0.0
    %206 = vmatpush1.msra.mxu0 0.0
    %207 = vmatprep.subr.mxu0 0.0
    %208 = vmatpush1.msra.mxu0 0.0
    %209 = vmatprep.subr.mxu0 0.0
    %210 = vmatpush1.msra.mxu0 0.0
    %211 = vmatprep.subr.mxu0 0.0
    %212 = vmatpush1.msra.mxu0 0.0
    %213 = vmatprep.subr.mxu0 0.0
    %214 = vmatpush1.msra.mxu0 0.0
    %215 = vmatprep.subr.mxu0 0.0
    %216 = vmatpush1.msra.mxu0 0.0
    %217 = vmatprep.subr.mxu0 0.0
    %218 = vmatpush1.msra.mxu0 0.0
    %219 = vmatprep.subr.mxu0 0.0
    %220 = vmatpush1.msra.mxu0 0.0
    %221 = vmatprep.subr.mxu0 0.0
    %222 = vmatpush1.msra.mxu0 0.0
    %223 = vmatprep.subr.mxu0 0.0
    %224 = vmatpush1.msra.mxu0 0.0
    %225 = vmatprep.subr.mxu0 0.0
    %226 = vmatpush1.msra.mxu0 0.0
    %227 = vmatprep.subr.mxu0 0.0
    %228 = vmatpush1.msra.mxu0 0.0
    %229 = vmatprep.subr.mxu0 0.0
    %230 = vmatpush1.msra.mxu0 0.0
    %231 = vmatprep.subr.mxu0 0.0
    %232 = vmatpush1.msra.mxu0 0.0
    %233 = vmatprep.subr.mxu0 0.0
    %234 = vmatpush1.msra.mxu0 0.0
    %235 = vmatprep.subr.mxu0 0.0
    %236 = vmatpush1.msra.mxu0 0.0
    %237 = vmatprep.subr.mxu0 0.0
    %238 = vmatpush1.msra.mxu0 0.0
    %239 = vmatprep.subr.mxu0 0.0
    %240 = vmatpush1.msra.mxu0 0.0
    %241 = vmatprep.subr.mxu0 0.0
    %242 = vmatpush1.msra.mxu0 0.0
    %243 = vmatprep.subr.mxu0 0.0
    %244 = vmatpush1.msra.mxu0 0.0
    %245 = vmatprep.subr.mxu0 0.0
    %246 = vmatpush1.msra.mxu0 0.0
    %247 = vmatprep.subr.mxu0 0.0
    %248 = vmatpush1.msra.mxu0 0.0
    %249 = vmatprep.subr.mxu0 0.0
    %250 = vmatpush1.msra.mxu0 0.0
    %251 = vmatprep.subr.mxu0 0.0
    %252 = vmatpush1.msra.mxu0 0.0
    %253 = vmatprep.mubr.f32.mxu0 0.0
    %254 = vmatmul.mubr.f32.gmra.mrb[0].mxu0 %v181
    %v255 = vpop.f32.mrb[0].mxu0
    %v256 = vadd.f32 %v167, %v255
    %v257 = vpop.f32.mrb[0].mxu0
    %258 = vmatprep.mubr.f32.mxu0 0.0
    %259 = vmatmul.mubr.f32.gmra.mrb[0].mxu0 %v184
    %v260 = vpop.f32.mrb[0].mxu0
    %v261 = vadd.f32 %v172, %v260
    %v262 = vpop.f32.mrb[0].mxu0
    %263 = vmatprep.mubr.f32.mxu0 0.0
    %264 = vmatmul.mubr.f32.gmra.mrb[0].mxu0 %v187
    %v265 = vpop.f32.mrb[0].mxu0
    %v266 = vadd.f32 %v177, %v265
    %v267 = vpop.f32.mrb[0].mxu0
    %268 = vdwg.mxu0
    %v269 = vmax.f32 %v256, 0.0
    %v270 = vmax.f32 %v261, 0.0
    %v271 = vmax.f32 %v266, 0.0
    %v272 = vld [vmem:[%s5] sm:$0x3f]
    %v273 = vld [vmem:[%s6] sm:$0x3f]
    %275 = vset.pattern.permute.xlu0 0
    %276 = vperm.xlu0 %275, %v273
    %v277 = vpop.permute.xlu0 %276
    %vm279 = vcmask 195584
    %v281 = vsel %vm279, %v272, 0
    %283 = vmatprep.subr.mxu0 0.0
    %284 = vmatpush1.msra.mxu0 %v269
    %285 = vmatprep.subr.mxu0 0.0
    %286 = vmatpush1.msra.mxu0 %v270
    %287 = vmatprep.subr.mxu0 0.0
    %288 = vmatpush1.msra.mxu0 %v271
    %289 = vmatprep.subr.mxu0 0.0
    %290 = vmatpush1.msra.mxu0 0.0
    %291 = vmatprep.subr.mxu0 0.0
    %292 = vmatpush1.msra.mxu0 0.0
    %293 = vmatprep.subr.mxu0 0.0
    %294 = vmatpush1.msra.mxu0 0.0
    %295 = vmatprep.subr.mxu0 0.0
    %296 = vmatpush1.msra.mxu0 0.0
    %297 = vmatprep.subr.mxu0 0.0
    %298 = vmatpush1.msra.mxu0 0.0
    %299 = vmatprep.subr.mxu0 0.0
    %300 = vmatpush1.msra.mxu0 0.0
    %301 = vmatprep.subr.mxu0 0.0
    %302 = vmatpush1.msra.mxu0 0.0
    %303 = vmatprep.subr.mxu0 0.0
    %304 = vmatpush1.msra.mxu0 0.0
    %305 = vmatprep.subr.mxu0 0.0
    %306 = vmatpush1.msra.mxu0 0.0
    %307 = vmatprep.subr.mxu0 0.0
    %308 = vmatpush1.msra.mxu0 0.0
    %309 = vmatprep.subr.mxu0 0.0
    %310 = vmatpush1.msra.mxu0 0.0
    %311 = vmatprep.subr.mxu0 0.0
    %312 = vmatpush1.msra.mxu0 0.0
    %313 = vmatprep.subr.mxu0 0.0
    %314 = vmatpush1.msra.mxu0 0.0
    %315 = vmatprep.subr.mxu0 0.0
    %316 = vmatpush1.msra.mxu0 0.0
    %317 = vmatprep.subr.mxu0 0.0
    %318 = vmatpush1.msra.mxu0 0.0
    %319 = vmatprep.subr.mxu0 0.0
    %320 = vmatpush1.msra.mxu0 0.0
    %321 = vmatprep.subr.mxu0 0.0
    %322 = vmatpush1.msra.mxu0 0.0
    %323 = vmatprep.subr.mxu0 0.0
    %324 = vmatpush1.msra.mxu0 0.0
    %325 = vmatprep.subr.mxu0 0.0
    %326 = vmatpush1.msra.mxu0 0.0
    %327 = vmatprep.subr.mxu0 0.0
    %328 = vmatpush1.msra.mxu0 0.0
    %329 = vmatprep.subr.mxu0 0.0
    %330 = vmatpush1.msra.mxu0 0.0
    %331 = vmatprep.subr.mxu0 0.0
    %332 = vmatpush1.msra.mxu0 0.0
    %333 = vmatprep.subr.mxu0 0.0
    %334 = vmatpush1.msra.mxu0 0.0
    %335 = vmatprep.subr.mxu0 0.0
    %336 = vmatpush1.msra.mxu0 0.0
    %337 = vmatprep.subr.mxu0 0.0
    %338 = vmatpush1.msra.mxu0 0.0
    %339 = vmatprep.subr.mxu0 0.0
    %340 = vmatpush1.msra.mxu0 0.0
    %341 = vmatprep.subr.mxu0 0.0
    %342 = vmatpush1.msra.mxu0 0.0
    %343 = vmatprep.subr.mxu0 0.0
    %344 = vmatpush1.msra.mxu0 0.0
    %345 = vmatprep.subr.mxu0 0.0
    %346 = vmatpush1.msra.mxu0 0.0
    %347 = vmatprep.mubr.f32.mxu0 0.0
    %348 = vmatmul.mubr.f32.gmra.mrb[0].mxu0 %v281
    %v349 = vpop.f32.mrb[0].mxu0
    %v350 = vadd.f32 %v277, %v349
    %v351 = vpop.f32.mrb[0].mxu0
    %352 = vdwg.mxu0
    %353 = vst [vmem:[#allocation2] sm:$0x3f] %v350
    // Predicated region
    $region30: #{tpu_custom_call.1} parent=1 // pred_check
      _
    $region31: #{tpu_custom_call.1} parent=1 // pred_check_branch
      %355 = sbr.rel (0) target = $region33
    $region32: #{tpu_custom_call.1} parent=1 // pred_region
      %s357 = ssub.s32 128, 128
      %358 = vsyncadd [#allocation3], %s357
      %s360 = sshll.u32 [#allocation2], 4
      %s361 = int_to_ptr.vmem [resolvable:$true] %s360
      %363 = dma.vmem_to_hbm [thread:$0]  %s361, 128, %s7, [#allocation3]
    $region33: #{tpu_custom_call.1} parent=1 // pred_fallthru
      _
    // Predicated region
    $region34: #{tpu_custom_call.1} parent=1 // pred_check
      _
    $region35: #{tpu_custom_call.1} parent=1 // pred_check_branch
      %365 = sbr.rel (0) target = $region37
    $region36: #{tpu_custom_call.1} parent=1 // pred_region
      %366 = dma.done [#allocation3], 128
    $region37: #{tpu_custom_call.1} parent=1 // pred_fallthru
      _
    %367 = vsyncpa [#allocation3], 1

</llo_original>
